<compile_context>
chip_gen: v6e
topology: v6e:2x2x1
jax: 0.10.0
libtpu: 0.0.40
codegen_flags: <defaults>
</compile_context>

<pallas_src>
import functools

import jax
import jax.numpy as jnp
from jax import lax
from jax.experimental import pallas as pl
from jax.experimental.pallas import tpu as pltpu


def _lca_kernel(x_ref, d_ref, a_ref, rec_ref, *, lambd, lr0, max_iter, tol, fac):
    x = x_ref[...].astype(jnp.float32)        # (B, N)
    D = d_ref[...].astype(jnp.float32)        # (N, K)

    # normalize_dictionary(): unit-norm columns (F.normalize(dim=0), eps=1e-12)
    col_norm = jnp.sqrt(jnp.sum(D * D, axis=0, keepdims=True))
    D = D / jnp.maximum(col_norm, 1e-12)
    Dt = D.T                                  # hoisted: transposed once, loop-invariant

    B, N = x.shape
    K = D.shape[1]
    fac0, fac1 = fac, 1.0 / fac               # candidate order matches torch: [fac, 1/fac]
    x2 = jnp.concatenate([x, x], axis=0)      # (2B, N) loop-invariant target for stacked candidates

    # Initial state (iteration 0 sees a = relu(0) = 0).
    u0 = jnp.zeros((B, K), jnp.float32)
    a0 = jnp.zeros((B, K), jnp.float32)
    rec0 = jnp.dot(a0, Dt, preferred_element_type=jnp.float32)              # (B, N) (zeros)
    loss0 = (jnp.mean((x - rec0) ** 2, axis=1, keepdims=True)
             + lambd * jnp.mean(a0, axis=1, keepdims=True))                 # (B, 1)
    lr_init = jnp.full((B, 1), lr0, jnp.float32)
    best0 = jnp.full((B, 1), jnp.inf, jnp.float32)

    def cond(carry):
        i, u, a, lr, best, rec, loss = carry
        # torch: `if torch.max(best_loss - loss) < self.tol: break`
        not_converged = jnp.max(best - loss) >= tol
        return jnp.logical_and(i < max_iter, not_converged)

    def body(carry):
        i, u, a, lr, best, rec, loss = carry
        best_new = loss

        # gradient step: du = (rec - x) @ D + lambd   (rec is carried, not recomputed)
        du = jnp.dot(rec - x, D, preferred_element_type=jnp.float32) + lambd  # (B, K)

        # Two candidate step sizes evaluated with a single stacked matmul.
        u_c0 = u - du * (lr * fac0)
        u_c1 = u - du * (lr * fac1)
        a_c = jnp.concatenate(
            [jnp.maximum(u_c0, 0.0), jnp.maximum(u_c1, 0.0)], axis=0)        # (2B, K)
        rec_c = jnp.dot(a_c, Dt, preferred_element_type=jnp.float32)         # (2B, N)
        # a_c >= 0, so the L1 term needs no abs.
        loss_c = (jnp.mean((x2 - rec_c) ** 2, axis=1, keepdims=True)
                  + lambd * jnp.mean(a_c, axis=1, keepdims=True))            # (2B, 1)

        l_c0, l_c1 = loss_c[:B], loss_c[B:]
        rec_c0, rec_c1 = rec_c[:B], rec_c[B:]

        # per-item argmin over candidates [fac, 1/fac]; tie -> index 0 (matches torch.argmin)
        take1 = l_c1 < l_c0                                                  # (B, 1)
        u_next = jnp.where(take1, u_c1, u_c0)
        a_next = jnp.maximum(u_next, 0.0)
        lr_next = lr * jnp.where(take1, fac1, fac0)
        rec_next = jnp.where(take1, rec_c1, rec_c0)                          # == a_next @ Dt
        loss_next = jnp.where(take1, l_c1, l_c0)
        return (i + 1, u_next, a_next, lr_next, best_new, rec_next, loss_next)

    init = (jnp.int32(0), u0, a0, lr_init, best0, rec0, loss0)
    _, _, a, _, _, rec, _ = lax.while_loop(cond, body, init)

    a_ref[...] = a
    rec_ref[...] = rec        # carried rec == a @ D.T of the final a; no epilogue matmul


def lca_forward(x, D, *, lambd=0.1, lr=None, max_iter=300, fac=0.5, tol=1e-6):
    """Forward pass of LCA: returns (a, x_recon)."""
    B, N = x.shape
    N2, K = D.shape
    assert N == N2, "D must be (input_dim, dict_size)"
    lr0 = (1.0 / K) if lr is None else float(lr)

    kernel = functools.partial(
        _lca_kernel, lambd=float(lambd), lr0=lr0, max_iter=int(max_iter),
        tol=float(tol), fac=float(fac),
    )
    a, x_recon = pl.pallas_call(
        kernel,
        out_shape=(
            jax.ShapeDtypeStruct((B, K), jnp.float32),
            jax.ShapeDtypeStruct((B, N), jnp.float32),
        ),
        in_specs=[
            pl.BlockSpec(memory_space=pltpu.MemorySpace.VMEM),
            pl.BlockSpec(memory_space=pltpu.MemorySpace.VMEM),
        ],
        out_specs=(
            pl.BlockSpec(memory_space=pltpu.MemorySpace.VMEM),
            pl.BlockSpec(memory_space=pltpu.MemorySpace.VMEM),
        ),
    )(x, D)
    return a, x_recon


if __name__ == "__main__":
    # Small, deterministic problem: LCA(input_dim=32, dict_size=128)
    batch, input_dim, dict_size = 8, 32, 128

    key = jax.random.PRNGKey(0)
    k_d, k_x = jax.random.split(key)
    # nn.Parameter(torch.randn(input_dim, dict_size)) analogue (normalized inside kernel)
    D = jax.random.normal(k_d, (input_dim, dict_size), dtype=jnp.float32)
    x = jax.random.normal(k_x, (batch, input_dim), dtype=jnp.float32)

    a, x_recon = lca_forward(
        x, D, lambd=0.1, lr=None, max_iter=300, fac=0.5, tol=1e-6
    )
    jax.block_until_ready((a, x_recon))

    assert a.shape == (batch, dict_size) and x_recon.shape == (batch, input_dim)
    assert bool(jnp.all(jnp.isfinite(a))) and bool(jnp.all(jnp.isfinite(x_recon)))
    # TODO(synk): verbose-mode per-iteration stats printing (L0/sparsity logging)
    # from the PyTorch module is intentionally not reproduced inside the kernel.
    print("KERNEL_OK")
</pallas_src>

<mosaic_0001>
module attributes {stable_mosaic.version = 11 : i64} {
  func.func @_lca_kernel(%arg0: memref<8x32xf32, #tpu.memory_space<vmem>>, %arg1: memref<32x128xf32, #tpu.memory_space<vmem>>, %arg2: memref<8x128xf32, #tpu.memory_space<vmem>>, %arg3: memref<8x32xf32, #tpu.memory_space<vmem>>) attributes {dimension_semantics = [], scalar_prefetch = 0 : i64, scratch_operands = 0 : i64, tpu.core_type = #tpu.core_type<tc>} {
    %c0 = arith.constant 0 : index
    %c0_0 = arith.constant 0 : index
    %0 = vector.load %arg0[%c0, %c0_0] : memref<8x32xf32, #tpu.memory_space<vmem>>, vector<8x32xf32>
    %c0_1 = arith.constant 0 : index
    %c0_2 = arith.constant 0 : index
    %1 = vector.load %arg1[%c0_1, %c0_2] : memref<32x128xf32, #tpu.memory_space<vmem>>, vector<32x128xf32>
    %2 = arith.mulf %1, %1 : vector<32x128xf32>
    %cst = arith.constant dense<0.000000e+00> : vector<128xf32>
    %3 = vector.multi_reduction <add>, %2, %cst [0] : vector<32x128xf32> to vector<128xf32>
    %4 = vector.shape_cast %3 : vector<128xf32> to vector<1x128xf32>
    %5 = math.sqrt %4 : vector<1x128xf32>
    %cst_3 = arith.constant 9.99999996E-13 : f32
    %6 = vector.broadcast %cst_3 : f32 to vector<1x128xf32>
    %7 = arith.maximumf %5, %6 : vector<1x128xf32>
    %8 = vector.broadcast %7 : vector<1x128xf32> to vector<32x128xf32>
    %9 = arith.divf %1, %8 : vector<32x128xf32>
    %10 = tpu.transpose %9, [1, 0] : vector<32x128xf32> -> vector<128x32xf32>
    %11 = tpu.concatenate %0, %0 in 0 : vector<8x32xf32>, vector<8x32xf32> -> vector<16x32xf32>
    %cst_4 = arith.constant 0.000000e+00 : f32
    %12 = vector.broadcast %cst_4 : f32 to vector<8x128xf32>
    %cst_5 = arith.constant 0.000000e+00 : f32
    %13 = vector.broadcast %cst_5 : f32 to vector<8x128xf32>
    %cst_6 = arith.constant dense<0.000000e+00> : vector<8x32xf32>
    %14 = tpu.matmul %13, %10, %cst_6 {dimension_numbers = #tpu.dot_dimension_numbers<[1], [0], [0], [1], [0, 0, 1, 1], [], []>} : vector<8x128xf32>, vector<128x32xf32>, vector<8x32xf32> -> vector<8x32xf32>
    %15 = arith.subf %0, %14 : vector<8x32xf32>
    %16 = arith.mulf %15, %15 : vector<8x32xf32>
    %cst_7 = arith.constant dense<0.000000e+00> : vector<8xf32>
    %17 = vector.multi_reduction <add>, %16, %cst_7 [1] : vector<8x32xf32> to vector<8xf32>
    %18 = vector.shape_cast %17 : vector<8xf32> to vector<8x1xf32>
    %cst_8 = arith.constant 3.200000e+01 : f32
    %19 = vector.broadcast %cst_8 : f32 to vector<8x1xf32>
    %20 = arith.divf %18, %19 : vector<8x1xf32>
    %cst_9 = arith.constant dense<0.000000e+00> : vector<8xf32>
    %21 = vector.multi_reduction <add>, %13, %cst_9 [1] : vector<8x128xf32> to vector<8xf32>
    %22 = vector.shape_cast %21 : vector<8xf32> to vector<8x1xf32>
    %cst_10 = arith.constant 1.280000e+02 : f32
    %23 = vector.broadcast %cst_10 : f32 to vector<8x1xf32>
    %24 = arith.divf %22, %23 : vector<8x1xf32>
    %cst_11 = arith.constant 1.000000e-01 : f32
    %25 = vector.broadcast %cst_11 : f32 to vector<8x1xf32>
    %26 = arith.mulf %25, %24 : vector<8x1xf32>
    %27 = arith.addf %20, %26 : vector<8x1xf32>
    %cst_12 = arith.constant 7.812500e-03 : f32
    %28 = vector.broadcast %cst_12 : f32 to vector<8x1xf32>
    %cst_13 = arith.constant 0x7F800000 : f32
    %29 = vector.broadcast %cst_13 : f32 to vector<8x1xf32>
    %c0_i32 = arith.constant 0 : i32
    %30:7 = scf.while (%arg4 = %c0_i32, %arg5 = %12, %arg6 = %13, %arg7 = %28, %arg8 = %29, %arg9 = %14, %arg10 = %27) : (i32, vector<8x128xf32>, vector<8x128xf32>, vector<8x1xf32>, vector<8x1xf32>, vector<8x32xf32>, vector<8x1xf32>) -> (i32, vector<8x128xf32>, vector<8x128xf32>, vector<8x1xf32>, vector<8x1xf32>, vector<8x32xf32>, vector<8x1xf32>) {
      %33 = arith.subf %arg8, %arg10 : vector<8x1xf32>
      %34 = vector.shape_cast %33 : vector<8x1xf32> to vector<1x8x1xf32>
      %cst_18 = arith.constant dense<0xFF800000> : vector<1xf32>
      %35 = vector.multi_reduction <maximumf>, %34, %cst_18 [1, 2] : vector<1x8x1xf32> to vector<1xf32>
      %36 = vector.shape_cast %35 : vector<1xf32> to vector<1x1x1xf32>
      %37 = vector.extract %36[0, 0, 0] : f32 from vector<1x1x1xf32>
      %cst_19 = arith.constant 9.99999997E-7 : f32
      %38 = arith.cmpf oge, %37, %cst_19 : f32
      %c300_i32 = arith.constant 300 : i32
      %39 = arith.cmpi slt, %arg4, %c300_i32 : i32
      %40 = arith.andi %39, %38 : i1
      scf.condition(%40) %arg4, %arg5, %arg6, %arg7, %arg8, %arg9, %arg10 : i32, vector<8x128xf32>, vector<8x128xf32>, vector<8x1xf32>, vector<8x1xf32>, vector<8x32xf32>, vector<8x1xf32>
    } do {
    ^bb0(%arg4: i32, %arg5: vector<8x128xf32>, %arg6: vector<8x128xf32>, %arg7: vector<8x1xf32>, %arg8: vector<8x1xf32>, %arg9: vector<8x32xf32>, %arg10: vector<8x1xf32>):
      %33 = arith.subf %arg9, %0 : vector<8x32xf32>
      %cst_18 = arith.constant dense<0.000000e+00> : vector<8x128xf32>
      %34 = tpu.matmul %33, %9, %cst_18 {dimension_numbers = #tpu.dot_dimension_numbers<[1], [0], [0], [1], [0, 0, 1, 1], [], []>} : vector<8x32xf32>, vector<32x128xf32>, vector<8x128xf32> -> vector<8x128xf32>
      %cst_19 = arith.constant 1.000000e-01 : f32
      %35 = vector.broadcast %cst_19 : f32 to vector<8x128xf32>
      %36 = arith.addf %34, %35 : vector<8x128xf32>
      %cst_20 = arith.constant 5.000000e-01 : f32
      %37 = vector.broadcast %cst_20 : f32 to vector<8x1xf32>
      %38 = arith.mulf %arg7, %37 : vector<8x1xf32>
      %39 = vector.broadcast %38 : vector<8x1xf32> to vector<8x128xf32>
      %40 = arith.mulf %36, %39 : vector<8x128xf32>
      %41 = arith.subf %arg5, %40 : vector<8x128xf32>
      %cst_21 = arith.constant 2.000000e+00 : f32
      %42 = vector.broadcast %cst_21 : f32 to vector<8x1xf32>
      %43 = arith.mulf %arg7, %42 : vector<8x1xf32>
      %44 = vector.broadcast %43 : vector<8x1xf32> to vector<8x128xf32>
      %45 = arith.mulf %36, %44 : vector<8x128xf32>
      %46 = arith.subf %arg5, %45 : vector<8x128xf32>
      %cst_22 = arith.constant 0.000000e+00 : f32
      %47 = vector.broadcast %cst_22 : f32 to vector<8x128xf32>
      %48 = arith.maximumf %41, %47 : vector<8x128xf32>
      %cst_23 = arith.constant 0.000000e+00 : f32
      %49 = vector.broadcast %cst_23 : f32 to vector<8x128xf32>
      %50 = arith.maximumf %46, %49 : vector<8x128xf32>
      %51 = tpu.concatenate %48, %50 in 0 : vector<8x128xf32>, vector<8x128xf32> -> vector<16x128xf32>
      %cst_24 = arith.constant dense<0.000000e+00> : vector<16x32xf32>
      %52 = tpu.matmul %51, %10, %cst_24 {dimension_numbers = #tpu.dot_dimension_numbers<[1], [0], [0], [1], [0, 0, 1, 1], [], []>} : vector<16x128xf32>, vector<128x32xf32>, vector<16x32xf32> -> vector<16x32xf32>
      %53 = arith.subf %11, %52 : vector<16x32xf32>
      %54 = arith.mulf %53, %53 : vector<16x32xf32>
      %cst_25 = arith.constant dense<0.000000e+00> : vector<16xf32>
      %55 = vector.multi_reduction <add>, %54, %cst_25 [1] : vector<16x32xf32> to vector<16xf32>
      %56 = vector.shape_cast %55 : vector<16xf32> to vector<16x1xf32>
      %cst_26 = arith.constant 3.200000e+01 : f32
      %57 = vector.broadcast %cst_26 : f32 to vector<16x1xf32>
      %58 = arith.divf %56, %57 : vector<16x1xf32>
      %cst_27 = arith.constant dense<0.000000e+00> : vector<16xf32>
      %59 = vector.multi_reduction <add>, %51, %cst_27 [1] : vector<16x128xf32> to vector<16xf32>
      %60 = vector.shape_cast %59 : vector<16xf32> to vector<16x1xf32>
      %cst_28 = arith.constant 1.280000e+02 : f32
      %61 = vector.broadcast %cst_28 : f32 to vector<16x1xf32>
      %62 = arith.divf %60, %61 : vector<16x1xf32>
      %cst_29 = arith.constant 1.000000e-01 : f32
      %63 = vector.broadcast %cst_29 : f32 to vector<16x1xf32>
      %64 = arith.mulf %63, %62 : vector<16x1xf32>
      %65 = arith.addf %58, %64 : vector<16x1xf32>
      %66 = vector.extract_strided_slice %65 {offsets = [0, 0], sizes = [8, 1], strides = [1, 1]} : vector<16x1xf32> to vector<8x1xf32>
      %67 = vector.extract_strided_slice %65 {offsets = [8, 0], sizes = [8, 1], strides = [1, 1]} : vector<16x1xf32> to vector<8x1xf32>
      %68 = vector.extract_strided_slice %52 {offsets = [0, 0], sizes = [8, 32], strides = [1, 1]} : vector<16x32xf32> to vector<8x32xf32>
      %69 = vector.extract_strided_slice %52 {offsets = [8, 0], sizes = [8, 32], strides = [1, 1]} : vector<16x32xf32> to vector<8x32xf32>
      %70 = arith.cmpf olt, %67, %66 : vector<8x1xf32>
      %71 = vector.shape_cast %70 : vector<8x1xi1> to vector<8x1xi1>
      %72 = vector.broadcast %71 : vector<8x1xi1> to vector<8x128xi1>
      %73 = arith.select %72, %46, %41 : vector<8x128xi1>, vector<8x128xf32>
      %cst_30 = arith.constant 0.000000e+00 : f32
      %74 = vector.broadcast %cst_30 : f32 to vector<8x128xf32>
      %75 = arith.maximumf %73, %74 : vector<8x128xf32>
      %cst_31 = arith.constant 2.000000e+00 : f32
      %cst_32 = arith.constant 5.000000e-01 : f32
      %76 = vector.broadcast %cst_31 : f32 to vector<8x1xf32>
      %77 = vector.broadcast %cst_32 : f32 to vector<8x1xf32>
      %78 = arith.select %70, %76, %77 : vector<8x1xi1>, vector<8x1xf32>
      %79 = arith.mulf %arg7, %78 : vector<8x1xf32>
      %80 = vector.shape_cast %70 : vector<8x1xi1> to vector<8x1xi1>
      %81 = vector.broadcast %80 : vector<8x1xi1> to vector<8x32xi1>
      %82 = arith.select %81, %69, %68 : vector<8x32xi1>, vector<8x32xf32>
      %83 = arith.select %70, %67, %66 : vector<8x1xi1>, vector<8x1xf32>
      %c1_i32 = arith.constant 1 : i32
      %84 = arith.addi %arg4, %c1_i32 : i32
      scf.yield %84, %73, %75, %79, %arg10, %82, %83 : i32, vector<8x128xf32>, vector<8x128xf32>, vector<8x1xf32>, vector<8x1xf32>, vector<8x32xf32>, vector<8x1xf32>
    }
    %c0_14 = arith.constant 0 : index
    %c0_15 = arith.constant 0 : index
    %31 = vector.load %arg2[%c0_14, %c0_15] : memref<8x128xf32, #tpu.memory_space<vmem>>, vector<8x128xf32>
    tpu.vector_store %arg2[%c0_14, %c0_15], %30#2 {strides = array<i32>} : memref<8x128xf32, #tpu.memory_space<vmem>>, vector<8x128xf32>,
    %c0_16 = arith.constant 0 : index
    %c0_17 = arith.constant 0 : index
    %32 = vector.load %arg3[%c0_16, %c0_17] : memref<8x32xf32, #tpu.memory_space<vmem>>, vector<8x32xf32>
    tpu.vector_store %arg3[%c0_16, %c0_17], %30#5 {strides = array<i32>} : memref<8x32xf32, #tpu.memory_space<vmem>>, vector<8x32xf32>,
    return
  }
}

</mosaic_0001>

<llo_original>
// kernel: tpu_custom_call.1
$region0: #{tpu_custom_call.1}
  #allocation0 [shape = 'u32[]', space=smem, size = 0x4, offset = 0x4, fixed_abs, tag = 'smem constant byte address 0x4 - core index']
  #allocation1 [shape = 'u32[144,128]{1,0:T(1,128)}', space=vmem, size = 0x12000, scoped, tag = 'internal scratch']
  %s0 = inlined_call_operand.hbm [shape: f32[8,32], index: 0, kind: input, shape index: {}]
  %s1 = inlined_call_operand.hbm [shape: f32[32,128], index: 1, kind: input, shape index: {}]
  %s2 = inlined_call_operand.hbm [shape: f32[8,128], index: 2, kind: output, shape index: {0}]
  %s3 = inlined_call_operand.hbm [shape: f32[8,32], index: 3, kind: output, shape index: {1}]
  %4 = xla_tuple %s2, %s3
  %s5 = sld [smem:[#allocation0]]
  $region41: #{tpu_custom_call.1} parent=0
    _
  %s7 = ssub.s32 1, %s5
  %s8 = scalar_select 0, %s7, %s5
  $region1: #{tpu_custom_call.1} parent=0
    #allocation2 [shape = 'u8[4096]{0}', space=vmem, size = 0x1000, scoped, tag = 'input window, operand 0, single buffered']
    #allocation3 [shape = 's32[1]{0}', space=sflag, size = 0x4, scoped, tag = 'scoped memory for tpu_custom_call.1']
    #allocation4 [shape = 's32[1]{0}', space=sflag, size = 0x4, scoped, tag = 'scoped memory for tpu_custom_call.1']
    #allocation5 [shape = 'u8[16384]{0}', space=vmem, size = 0x4000, scoped, tag = 'input window, operand 1, single buffered']
    #allocation6 [shape = 's32[1]{0}', space=sflag, size = 0x4, scoped, tag = 'scoped memory for tpu_custom_call.1']
    #allocation7 [shape = 'u8[4096]{0}', space=vmem, size = 0x1000, scoped, tag = 'output window, operand 0, single buffered']
    #allocation8 [shape = 'u8[4096]{0}', space=vmem, size = 0x1000, scoped, tag = 'output window, operand 1, single buffered']
    #allocation9 [shape = 's32[1]{0}', space=sflag, size = 0x4, scoped, tag = 'scoped memory for tpu_custom_call.1']
    %9 = vsyncpa [#allocation3], 0
    %10 = vsyncpa [#allocation6], 0
    %11 = vsyncpa [#allocation4], 0
    %12 = vsyncpa [#allocation9], 0
    // Predicated region
    $region2: #{tpu_custom_call.1} parent=1 // pred_check
      _
    $region3: #{tpu_custom_call.1} parent=1 // pred_check_branch
      %14 = sbr.rel (0) target = $region5
    $region4: #{tpu_custom_call.1} parent=1 // pred_region
      %s16 = ssub.s32 128, 128
      %17 = vsyncadd [#allocation3], %s16
      %s19 = sshll.u32 [#allocation2], 4
      %s20 = int_to_ptr.vmem [resolvable:$true] %s19
      %22 = dma.hbm_to_vmem [thread:$0]  %s0, 128, %s20, [#allocation3]
    $region5: #{tpu_custom_call.1} parent=1 // pred_fallthru
      _
    // Predicated region
    $region6: #{tpu_custom_call.1} parent=1 // pred_check
      _
    $region7: #{tpu_custom_call.1} parent=1 // pred_check_branch
      %24 = sbr.rel (0) target = $region9
    $region8: #{tpu_custom_call.1} parent=1 // pred_region
      %s26 = ssub.s32 512, 512
      %27 = vsyncadd [#allocation6], %s26
      %s28 = sshll.u32 [#allocation5], 4
      %s29 = int_to_ptr.vmem [resolvable:$true] %s28
      %34 = dma.hbm_to_vmem [thread:$0]  %s1, 512, %s29, [#allocation6], 128, 128, 8
    $region9: #{tpu_custom_call.1} parent=1 // pred_fallthru
      _
    // Predicated region
    $region10: #{tpu_custom_call.1} parent=1 // pred_check
      _
    $region11: #{tpu_custom_call.1} parent=1 // pred_check_branch
      %36 = sbr.rel (0) target = $region13
    $region12: #{tpu_custom_call.1} parent=1 // pred_region
      %37 = dma.done [#allocation3], 128
    $region13: #{tpu_custom_call.1} parent=1 // pred_fallthru
      _
    // Predicated region
    $region14: #{tpu_custom_call.1} parent=1 // pred_check
      _
    $region15: #{tpu_custom_call.1} parent=1 // pred_check_branch
      %39 = sbr.rel (0) target = $region17
    $region16: #{tpu_custom_call.1} parent=1 // pred_region
      %40 = dma.done [#allocation6], 512
    $region17: #{tpu_custom_call.1} parent=1 // pred_fallthru
      _
    %v41 = vld [vmem:[#allocation2] sm:$0xff]
    %v42 = vld [vmem:[#allocation5] sm:$0xff]
    %v43 = vld [vmem:[#allocation5 + $0x8] sm:$0xff]
    %v44 = vld [vmem:[#allocation5 + $0x10] sm:$0xff]
    %v45 = vld [vmem:[#allocation5 + $0x18] sm:$0xff]
    %v46 = vmul.f32 %v42, %v42
    %v47 = vmul.f32 %v43, %v43
    %v48 = vmul.f32 %v44, %v44
    %v49 = vmul.f32 %v45, %v45
    %v50 = vadd.f32 %v46, %v47
    %v51 = vadd.f32 %v50, %v48
    %v52 = vadd.f32 %v51, %v49
    %v53 = vrot.slane %v52, 4
    %v54 = vadd.f32 %v52, %v53
    %v55 = vrot.slane %v54, 2
    %v56 = vadd.f32 %v54, %v55
    %v57 = vrot.slane %v56, 1
    %v58 = vadd.f32 %v56, %v57
    %v59 = vrsqrt.pop %v58
    %v60 = vmul.f32 %v58, %v59
    %vm61 = vcmp.eq.f32.partialorder %v58, inf
    %v62 = vsel %vm61, %v58, %v60
    %vm63 = vcmp.eq.f32.partialorder %v58, 0.0
    %v64 = vand.u32 %v58, 2147483648
    %v65 = vsel %vm63, %v64, %v62
    %v66 = vmax.f32 %v65, 1e-12
    %v67 = vrcp.pop %v66
    %v68 = vmul.f32 %v42, %v67
    %v69 = vmul.f32 %v43, %v67
    %v70 = vmul.f32 %v44, %v67
    %v71 = vmul.f32 %v45, %v67
    %72 = vmatprep.subr.mxu0 0.0
    %73 = vmatpush1.xpose.msra.mxu0 0.0
    %74 = vmatprep.subr.mxu0 0.0
    %75 = vmatpush1.xpose.msra.mxu0 0.0
    %76 = vmatprep.subr.mxu0 0.0
    %77 = vmatpush1.xpose.msra.mxu0 0.0
    %78 = vmatprep.subr.mxu0 0.0
    %79 = vmatpush1.xpose.msra.mxu0 0.0
    %80 = vmatprep.subr.mxu0 0.0
    %81 = vmatpush1.xpose.msra.mxu0 0.0
    %82 = vmatprep.subr.mxu0 0.0
    %83 = vmatpush1.xpose.msra.mxu0 0.0
    %84 = vmatprep.subr.mxu0 0.0
    %85 = vmatpush1.xpose.msra.mxu0 0.0
    %86 = vmatprep.subr.mxu0 0.0
    %87 = vmatpush1.xpose.msra.mxu0 0.0
    %88 = vmatprep.subr.mxu0 0.0
    %89 = vmatpush1.xpose.msra.mxu0 0.0
    %90 = vmatprep.subr.mxu0 0.0
    %91 = vmatpush1.xpose.msra.mxu0 0.0
    %92 = vmatprep.subr.mxu0 0.0
    %93 = vmatpush1.xpose.msra.mxu0 0.0
    %94 = vmatprep.subr.mxu0 0.0
    %95 = vmatpush1.xpose.msra.mxu0 0.0
    %96 = vmatprep.subr.mxu0 0.0
    %97 = vmatpush1.xpose.msra.mxu0 %v71
    %98 = vmatprep.subr.mxu0 0.0
    %99 = vmatpush1.xpose.msra.mxu0 %v70
    %100 = vmatprep.subr.mxu0 0.0
    %101 = vmatpush1.xpose.msra.mxu0 %v69
    %102 = vmatprep.subr.mxu0 0.0
    %103 = vmatpush1.xpose.msra.mxu0 %v68
    %104 = vmatprep.subr.mxu0 0.0
    %105 = vmatpush2.xpose.msra.mxu0 0.0
    %106 = vmatprep.subr.mxu0 0.0
    %107 = vmatpush2.xpose.msra.mxu0 0.0
    %108 = vmatprep.subr.mxu0 0.0
    %109 = vmatpush2.xpose.msra.mxu0 0.0
    %110 = vmatprep.subr.mxu0 0.0
    %111 = vmatpush2.xpose.msra.mxu0 0.0
    %112 = vmatprep.subr.mxu0 0.0
    %113 = vmatpush2.xpose.msra.mxu0 0.0
    %114 = vmatprep.subr.mxu0 0.0
    %115 = vmatpush2.xpose.msra.mxu0 0.0
    %116 = vmatprep.subr.mxu0 0.0
    %117 = vmatpush2.xpose.msra.mxu0 0.0
    %118 = vmatprep.subr.mxu0 0.0
    %119 = vmatpush2.xpose.msra.mxu0 0.0
    %120 = vmatprep.subr.mxu0 0.0
    %121 = vmatpush2.xpose.msra.mxu0 0.0
    %122 = vmatprep.subr.mxu0 0.0
    %123 = vmatpush2.xpose.msra.mxu0 0.0
    %124 = vmatprep.subr.mxu0 0.0
    %125 = vmatpush2.xpose.msra.mxu0 0.0
    %126 = vmatprep.subr.mxu0 0.0
    %127 = vmatpush2.xpose.msra.mxu0 0.0
    %128 = vmatprep.subr.mxu0 0.0
    %129 = vmatpush2.xpose.msra.mxu0 0.0
    %130 = vmatprep.subr.mxu0 0.0
    %131 = vmatpush2.xpose.msra.mxu0 0.0
    %132 = vmatprep.subr.mxu0 0.0
    %133 = vmatpush2.xpose.msra.mxu0 0.0
    %134 = vmatprep.subr.mxu0 0.0
    %135 = vmatpush2.xpose.msra.mxu0 0.0
    %136 = vmatprep.mubr.f32.mxu0 0.0
    %137 = vmatmul.mubr.f32.gmra.mxu0 0.0
    %v138 = vpop.f32.mrf.mxu0
    %v139 = vadd.f32 0.0, %v138
    %v140 = vpop.f32.mrf.mxu0
    %141 = vdwg.mxu0
    %v142 = vsub.f32 %v41, %v139
    %v143 = vmul.f32 %v142, %v142
    %vm144 = vcmask 261120
    %v145 = vsel %vm144, %v143, 0.0
    %146 = vadd.xlane.f32.xlu0 %v145
    %v147 = vpop.xlane.xlu0 %146
    %v148 = vrcp.pop 32.0
    %v149 = vmul.f32 %v147, %v148
    %150 = vadd.xlane.f32.xlu0 0.0
    %v151 = vpop.xlane.xlu0 %150
    %v152 = vrcp.pop 128.0
    %v153 = vmul.f32 %v151, %v152
    %v154 = vmul.f32 %v153, 0.1
    %v155 = vadd.f32 %v149, %v154
    // While loop
    $region18: #{tpu_custom_call.1} parent=1 // loop_pre_header
      _
    $region19: #{tpu_custom_call.1} parent=1 // loop_header
      %s157 = sphi 0, %s366
      %v158 = vphi 0.0, %v360
      %v159 = vphi 0.0, %v361
      %v160 = vphi 0.0078125, %v363
      %v161 = vphi inf, %v163
      %v162 = vphi %v139, %v364
      %v163 = vphi %v155, %v365
      %v164 = vsub.f32 %v161, %v163
      %v165 = vrot.slane %v164, 4
      %v166 = vmax.f32 %v164, %v165
      %v167 = vrot.slane %v166, 2
      %v168 = vmax.f32 %v166, %v167
      %v169 = vrot.slane %v168, 1
      %v170 = vmax.f32 %v168, %v169
      %s171 = vtos %v170
      %p172 = scmp.ge.f32.partialorder %s171, 1e-06
      %p173 = scmp.lt.s32.totalorder %s157, 300
      %p174 = pnand %p173, %p172
      %p175 = pneg %p174
    $region20: #{tpu_custom_call.1} parent=1 // loop_header_branch
      %177 = sbr.rel (%p174) target = $region24
    $region21: #{tpu_custom_call.1} parent=1 // loop_body
      %v178 = vsub.f32 %v162, %v41
      %v180 = vsel %vm144, %v178, 0
      %182 = vmatprep.subr.mxu0 0.0
      %183 = vmatpush1.msra.mxu0 0.0
      %184 = vmatprep.subr.mxu0 0.0
      %185 = vmatpush1.msra.mxu0 0.0
      %186 = vmatprep.subr.mxu0 0.0
      %187 = vmatpush1.msra.mxu0 0.0
      %188 = vmatprep.subr.mxu0 0.0
      %189 = vmatpush1.msra.mxu0 0.0
      %190 = vmatprep.subr.mxu0 0.0
      %191 = vmatpush1.msra.mxu0 0.0
      %192 = vmatprep.subr.mxu0 0.0
      %193 = vmatpush1.msra.mxu0 0.0
      %194 = vmatprep.subr.mxu0 0.0
      %195 = vmatpush1.msra.mxu0 0.0
      %196 = vmatprep.subr.mxu0 0.0
      %197 = vmatpush1.msra.mxu0 0.0
      %198 = vmatprep.subr.mxu0 0.0
      %199 = vmatpush1.msra.mxu0 0.0
      %200 = vmatprep.subr.mxu0 0.0
      %201 = vmatpush1.msra.mxu0 0.0
      %202 = vmatprep.subr.mxu0 0.0
      %203 = vmatpush1.msra.mxu0 0.0
      %204 = vmatprep.subr.mxu0 0.0
      %205 = vmatpush1.msra.mxu0 0.0
      %206 = vmatprep.subr.mxu0 0.0
      %207 = vmatpush1.msra.mxu0 %v71
      %208 = vmatprep.subr.mxu0 0.0
      %209 = vmatpush1.msra.mxu0 %v70
      %210 = vmatprep.subr.mxu0 0.0
      %211 = vmatpush1.msra.mxu0 %v69
      %212 = vmatprep.subr.mxu0 0.0
      %213 = vmatpush1.msra.mxu0 %v68
      %214 = vmatprep.subr.mxu0 0.0
      %215 = vmatpush2.msra.mxu0 0.0
      %216 = vmatprep.subr.mxu0 0.0
      %217 = vmatpush2.msra.mxu0 0.0
      %218 = vmatprep.subr.mxu0 0.0
      %219 = vmatpush2.msra.mxu0 0.0
      %220 = vmatprep.subr.mxu0 0.0
      %221 = vmatpush2.msra.mxu0 0.0
      %222 = vmatprep.subr.mxu0 0.0
      %223 = vmatpush2.msra.mxu0 0.0
      %224 = vmatprep.subr.mxu0 0.0
      %225 = vmatpush2.msra.mxu0 0.0
      %226 = vmatprep.subr.mxu0 0.0
      %227 = vmatpush2.msra.mxu0 0.0
      %228 = vmatprep.subr.mxu0 0.0
      %229 = vmatpush2.msra.mxu0 0.0
      %230 = vmatprep.subr.mxu0 0.0
      %231 = vmatpush2.msra.mxu0 0.0
      %232 = vmatprep.subr.mxu0 0.0
      %233 = vmatpush2.msra.mxu0 0.0
      %234 = vmatprep.subr.mxu0 0.0
      %235 = vmatpush2.msra.mxu0 0.0
      %236 = vmatprep.subr.mxu0 0.0
      %237 = vmatpush2.msra.mxu0 0.0
      %238 = vmatprep.subr.mxu0 0.0
      %239 = vmatpush2.msra.mxu0 0.0
      %240 = vmatprep.subr.mxu0 0.0
      %241 = vmatpush2.msra.mxu0 0.0
      %242 = vmatprep.subr.mxu0 0.0
      %243 = vmatpush2.msra.mxu0 0.0
      %244 = vmatprep.subr.mxu0 0.0
      %245 = vmatpush2.msra.mxu0 0.0
      %246 = vmatprep.mubr.f32.mxu0 0.0
      %247 = vmatmul.mubr.f32.gmra.mxu0 %v180
      %v248 = vpop.f32.mrf.mxu0
      %v249 = vadd.f32 0.1, %v248
      %v250 = vpop.f32.mrf.mxu0
      %251 = vdwg.mxu0
      %v252 = vmul.f32 %v160, 0.5
      %v253 = vmul.f32 %v249, %v252
      %v254 = vsub.f32 %v158, %v253
      %v255 = vmul.f32 %v160, 2.0
      %v256 = vmul.f32 %v249, %v255
      %v257 = vsub.f32 %v158, %v256
      %v258 = vmax.f32 %v254, 0.0
      %v259 = vmax.f32 %v257, 0.0
      %260 = vmatprep.subr.mxu0 0.0
      %261 = vmatpush1.xpose.msra.mxu0 0.0
      %262 = vmatprep.subr.mxu0 0.0
      %263 = vmatpush1.xpose.msra.mxu0 0.0
      %264 = vmatprep.subr.mxu0 0.0
      %265 = vmatpush1.xpose.msra.mxu0 0.0
      %266 = vmatprep.subr.mxu0 0.0
      %267 = vmatpush1.xpose.msra.mxu0 0.0
      %268 = vmatprep.subr.mxu0 0.0
      %269 = vmatpush1.xpose.msra.mxu0 0.0
      %270 = vmatprep.subr.mxu0 0.0
      %271 = vmatpush1.xpose.msra.mxu0 0.0
      %272 = vmatprep.subr.mxu0 0.0
      %273 = vmatpush1.xpose.msra.mxu0 0.0
      %274 = vmatprep.subr.mxu0 0.0
      %275 = vmatpush1.xpose.msra.mxu0 0.0
      %276 = vmatprep.subr.mxu0 0.0
      %277 = vmatpush1.xpose.msra.mxu0 0.0
      %278 = vmatprep.subr.mxu0 0.0
      %279 = vmatpush1.xpose.msra.mxu0 0.0
      %280 = vmatprep.subr.mxu0 0.0
      %281 = vmatpush1.xpose.msra.mxu0 0.0
      %282 = vmatprep.subr.mxu0 0.0
      %283 = vmatpush1.xpose.msra.mxu0 0.0
      %284 = vmatprep.subr.mxu0 0.0
      %285 = vmatpush1.xpose.msra.mxu0 %v71
      %286 = vmatprep.subr.mxu0 0.0
      %287 = vmatpush1.xpose.msra.mxu0 %v70
      %288 = vmatprep.subr.mxu0 0.0
      %289 = vmatpush1.xpose.msra.mxu0 %v69
      %290 = vmatprep.subr.mxu0 0.0
      %291 = vmatpush1.xpose.msra.mxu0 %v68
      %292 = vmatprep.subr.mxu0 0.0
      %293 = vmatpush2.xpose.msra.mxu0 0.0
      %294 = vmatprep.subr.mxu0 0.0
      %295 = vmatpush2.xpose.msra.mxu0 0.0
      %296 = vmatprep.subr.mxu0 0.0
      %297 = vmatpush2.xpose.msra.mxu0 0.0
      %298 = vmatprep.subr.mxu0 0.0
      %299 = vmatpush2.xpose.msra.mxu0 0.0
      %300 = vmatprep.subr.mxu0 0.0
      %301 = vmatpush2.xpose.msra.mxu0 0.0
      %302 = vmatprep.subr.mxu0 0.0
      %303 = vmatpush2.xpose.msra.mxu0 0.0
      %304 = vmatprep.subr.mxu0 0.0
      %305 = vmatpush2.xpose.msra.mxu0 0.0
      %306 = vmatprep.subr.mxu0 0.0
      %307 = vmatpush2.xpose.msra.mxu0 0.0
      %308 = vmatprep.subr.mxu0 0.0
      %309 = vmatpush2.xpose.msra.mxu0 0.0
      %310 = vmatprep.subr.mxu0 0.0
      %311 = vmatpush2.xpose.msra.mxu0 0.0
      %312 = vmatprep.subr.mxu0 0.0
      %313 = vmatpush2.xpose.msra.mxu0 0.0
      %314 = vmatprep.subr.mxu0 0.0
      %315 = vmatpush2.xpose.msra.mxu0 0.0
      %316 = vmatprep.subr.mxu0 0.0
      %317 = vmatpush2.xpose.msra.mxu0 0.0
      %318 = vmatprep.subr.mxu0 0.0
      %319 = vmatpush2.xpose.msra.mxu0 0.0
      %320 = vmatprep.subr.mxu0 0.0
      %321 = vmatpush2.xpose.msra.mxu0 0.0
      %322 = vmatprep.subr.mxu0 0.0
      %323 = vmatpush2.xpose.msra.mxu0 0.0
      %324 = vmatprep.mubr.f32.mxu0 0.0
      %325 = vmatmul.mubr.f32.gmra.mxu0 %v258
      %v326 = vpop.f32.mrf.mxu0
      %v327 = vadd.f32 0.0, %v326
      %v328 = vpop.f32.mrf.mxu0
      %329 = vmatprep.mubr.f32.mxu0 0.0
      %330 = vmatmul.mubr.f32.gmra.mxu0 %v259
      %v331 = vpop.f32.mrf.mxu0
      %v332 = vadd.f32 0.0, %v331
      %v333 = vpop.f32.mrf.mxu0
      %334 = vdwg.mxu0
      %v335 = vsub.f32 %v41, %v327
      %v336 = vsub.f32 %v41, %v332
      %v337 = vmul.f32 %v335, %v335
      %v338 = vmul.f32 %v336, %v336
      %v339 = vsel %vm144, %v337, 0.0
      %340 = vadd.xlane.f32.xlu0 %v339
      %v341 = vpop.xlane.xlu0 %340
      %v342 = vsel %vm144, %v338, 0.0
      %343 = vadd.xlane.f32.xlu0 %v342
      %v344 = vpop.xlane.xlu0 %343
      %v345 = vmul.f32 %v341, %v148
      %v346 = vmul.f32 %v344, %v148
      %347 = vadd.xlane.f32.xlu0 %v258
      %v348 = vpop.xlane.xlu0 %347
      %349 = vadd.xlane.f32.xlu0 %v259
      %v350 = vpop.xlane.xlu0 %349
      %v351 = vmul.f32 %v348, %v152
      %v352 = vmul.f32 %v350, %v152
      %v353 = vmul.f32 %v351, 0.1
      %v354 = vmul.f32 %v352, 0.1
      %v355 = vadd.f32 %v345, %v353
      %v356 = vadd.f32 %v346, %v354
      %vm357 = vcmp.lt.f32.partialorder %v356, %v355
      %v358 = vsel %vm357, 1, 0
      %vm359 = vcmp.eq.s32.totalorder %v358, 1
      %v360 = vsel %vm359, %v257, %v254
      %v361 = vmax.f32 %v360, 0.0
      %v362 = vsel %vm357, 2.0, 0.5
      %v363 = vmul.f32 %v160, %v362
      %v364 = vsel %vm359, %v332, %v327
      %v365 = vsel %vm357, %v356, %v355
      %s366 = sadd.s32 %s157, 1
    $region22: #{tpu_custom_call.1} parent=1 // loop_footer
      _
    $region23: #{tpu_custom_call.1} parent=1 // loop_footer_branch
      %156 = sbr.rel target = $region19
    $region24: #{tpu_custom_call.1} parent=1 // loop_exit
      _
    %367 = vst [vmem:[#allocation7] sm:$0xff] %v159
    %368 = vst.msk [vmem:[#allocation8] sm:$0xff] %vm144, %v162
    // Predicated region
    $region25: #{tpu_custom_call.1} parent=1 // pred_check
      _
    $region26: #{tpu_custom_call.1} parent=1 // pred_check_branch
      %370 = sbr.rel (0) target = $region28
    $region27: #{tpu_custom_call.1} parent=1 // pred_region
      %s372 = ssub.s32 128, 128
      %373 = vsyncadd [#allocation4], %s372
      %s375 = sshll.u32 [#allocation7], 4
      %s376 = int_to_ptr.vmem [resolvable:$true] %s375
      %378 = dma.vmem_to_hbm [thread:$0]  %s376, 128, %s2, [#allocation4]
    $region28: #{tpu_custom_call.1} parent=1 // pred_fallthru
      _
    // Predicated region
    $region29: #{tpu_custom_call.1} parent=1 // pred_check
      _
    $region30: #{tpu_custom_call.1} parent=1 // pred_check_branch
      %380 = sbr.rel (0) target = $region32
    $region31: #{tpu_custom_call.1} parent=1 // pred_region
      %s382 = ssub.s32 128, 128
      %383 = vsyncadd [#allocation9], %s382
      %s385 = sshll.u32 [#allocation8], 4
      %s386 = int_to_ptr.vmem [resolvable:$true] %s385
      %388 = dma.vmem_to_hbm [thread:$0]  %s386, 128, %s3, [#allocation9]
    $region32: #{tpu_custom_call.1} parent=1 // pred_fallthru
      _
    // Predicated region
    $region33: #{tpu_custom_call.1} parent=1 // pred_check
      _
    $region34: #{tpu_custom_call.1} parent=1 // pred_check_branch
      %390 = sbr.rel (0) target = $region36
    $region35: #{tpu_custom_call.1} parent=1 // pred_region
      %391 = dma.done [#allocation4], 128
    $region36: #{tpu_custom_call.1} parent=1 // pred_fallthru
      _
    // Predicated region
    $region37: #{tpu_custom_call.1} parent=1 // pred_check
      _
    $region38: #{tpu_custom_call.1} parent=1 // pred_check_branch
      %393 = sbr.rel (0) target = $region40
    $region39: #{tpu_custom_call.1} parent=1 // pred_region
      %394 = dma.done [#allocation9], 128
    $region40: #{tpu_custom_call.1} parent=1 // pred_fallthru
      _
    %395 = vsyncpa [#allocation3], 1
    %396 = vsyncpa [#allocation6], 1
    %397 = vsyncpa [#allocation4], 1
    %398 = vsyncpa [#allocation9], 1

</llo_original>
